<compile_context>
chip_gen: v5e
topology: v5e:2x2
jax: 0.10.0
libtpu: 0.0.40
codegen_flags: <defaults>
</compile_context>

<pallas_src>
from functools import partial

import jax
import jax.numpy as jnp
from jax import lax
from jax.experimental import pallas as pl
from jax.experimental.pallas import tpu as pltpu

BN_EPS = 1e-5
LANE = 128           # feature dims padded to lane multiples -> unmasked vst, full MXU feeds
BATCH_ALIGN = 16     # sublane alignment for bf16-stored activation tiles
MAX_BATCH_TILE = 512


def _round_up(n, m):
    return ((n + m - 1) // m) * m


def _vmem_budget_bytes():
    """~75% of this generation's physical VMEM (v5e/v6e ~96 MiB, v7x ~48 MiB)."""
    cap = 64 * 1024 * 1024  # conservative fallback (v7x-sized) if query fails
    try:
        cap = int(pltpu.get_tpu_info().vmem_capacity_bytes)
    except Exception:
        pass
    return max(16 * 1024 * 1024, (cap * 3) // 4)


# ---------------------------------------------------------------------------
# Fused single-call kernel (small problems): activations never leave VMEM.
# ---------------------------------------------------------------------------

def _fused_mlp_kernel(valid_rows, needs_mask,
                      x_ref, w1_ref, w2_ref, w3_ref,
                      g1_ref, be1_ref, g2_ref, be2_ref, b3_ref, o_ref):
    inv_n = 1.0 / valid_rows

    def bn_relu(z, g, be):
        # Training-mode BN folded to one affine: scale = g*rsqrt(var+eps),
        # shift = be - mu*scale.  Single-sweep (sum, sum-of-squares) stats.
        mu = jnp.sum(z, axis=0, keepdims=True) * inv_n
        var = jnp.maximum(jnp.sum(z * z, axis=0, keepdims=True) * inv_n - mu * mu, 0.0)
        scale = g * lax.rsqrt(var + BN_EPS)
        shift = be - mu * scale
        return jnp.maximum(z * scale + shift, 0.0)

    z1 = jnp.dot(x_ref[...], w1_ref[...], preferred_element_type=jnp.float32)
    h1 = bn_relu(z1, g1_ref[...], be1_ref[...])
    if needs_mask:  # zero padded batch rows so layer-2 BN stats stay exact
        row = lax.broadcasted_iota(jnp.int32, h1.shape, 0)
        h1 = jnp.where(row < valid_rows, h1, 0.0)
    z2 = jnp.dot(h1.astype(w2_ref.dtype), w2_ref[...],
                 preferred_element_type=jnp.float32)
    h2 = bn_relu(z2, g2_ref[...], be2_ref[...])
    out = jnp.dot(h2.astype(w3_ref.dtype), w3_ref[...],
                  preferred_element_type=jnp.float32) + b3_ref[...]
    o_ref[...] = out.astype(o_ref.dtype)


# ---------------------------------------------------------------------------
# Batch-tiled kernels (one batch tile per grid step; weights stay resident).
# ---------------------------------------------------------------------------

def _linear_stats_kernel(x_ref, w_ref, z_ref, stats_ref):
    """z = x @ W (bf16 MXU feeds, f32 acc); bf16 z out + f32 per-tile (sum, sumsq)."""
    z = jnp.dot(x_ref[...], w_ref[...], preferred_element_type=jnp.float32)
    stats_ref[0, 0:1, :] = jnp.sum(z, axis=0, keepdims=True)
    stats_ref[0, 1:2, :] = jnp.sum(z * z, axis=0, keepdims=True)
    z_ref[...] = z.astype(z_ref.dtype)


def _bn_relu_linear_stats_kernel(valid_rows, tile_rows, needs_mask,
                                 z_ref, scale_ref, shift_ref, w_ref,
                                 z2_ref, stats_ref):
    """h = relu(z*scale + shift); z2 = h @ W (bf16 MXU); per-tile (sum, sumsq) of z2."""
    h = jnp.maximum(z_ref[...].astype(jnp.float32) * scale_ref[...] + shift_ref[...], 0.0)
    if needs_mask:
        # Only the last tile can contain padded rows; this compare+select is
        # negligible next to the matmul and is skipped entirely (trace-time)
        # when the batch is a tile multiple.
        row = pl.program_id(0) * tile_rows + lax.broadcasted_iota(jnp.int32, h.shape, 0)
        h = jnp.where(row < valid_rows, h, 0.0)
    z2 = jnp.dot(h.astype(w_ref.dtype), w_ref[...], preferred_element_type=jnp.float32)
    stats_ref[0, 0:1, :] = jnp.sum(z2, axis=0, keepdims=True)
    stats_ref[0, 1:2, :] = jnp.sum(z2 * z2, axis=0, keepdims=True)
    z2_ref[...] = z2.astype(z2_ref.dtype)


def _bn_relu_linear_bias_kernel(z_ref, scale_ref, shift_ref, w_ref, b_ref, o_ref):
    """out = relu(z*scale + shift) @ W + b (padded rows are discarded by the caller)."""
    h = jnp.maximum(z_ref[...].astype(jnp.float32) * scale_ref[...] + shift_ref[...], 0.0)
    out = jnp.dot(h.astype(w_ref.dtype), w_ref[...],
                  preferred_element_type=jnp.float32) + b_ref[...]
    o_ref[...] = out.astype(o_ref.dtype)


# ---------------------------------------------------------------------------
# Wrapper
# ---------------------------------------------------------------------------

def _stats_to_scale_shift(stats, gamma, beta, n_rows):
    """Fold batch stats + BN affine into one (1,H) scale / shift pair."""
    s1 = jnp.sum(stats[:, 0, :], axis=0)
    s2 = jnp.sum(stats[:, 1, :], axis=0)
    inv_n = 1.0 / n_rows
    mu = s1 * inv_n
    var = jnp.maximum(s2 * inv_n - mu * mu, 0.0)  # single-sweep biased variance
    scale = gamma[0] * lax.rsqrt(var + BN_EPS)
    shift = beta[0] - mu * scale
    return scale[None, :], shift[None, :]


def _fused_vmem_bytes(b_p, din_p, h_p, f_p):
    weights = (din_p * h_p + h_p * h_p + h_p * f_p) * 2
    io = b_p * din_p * 2 + b_p * f_p * 4
    temps = 4 * b_p * h_p * 4  # z1 / h1 / z2 / h2 f32 working sets (upper bound)
    vecs = (8 * h_p + 2 * f_p) * 4
    return weights + io + temps + vecs


def _pick_batch_tile(B, din_p, h_p, f_p, budget):
    min_tiles = 2 if B >= 2 * BATCH_ALIGN else 1  # keep both v7x TCs busy
    n_target = max(pl.cdiv(B, MAX_BATCH_TILE), min_tiles)
    tb = _round_up(pl.cdiv(B, n_target), BATCH_ALIGN)

    def step_bytes(t):
        w_resident = max(din_p * h_p, h_p * h_p, h_p * f_p) * 2  # single buffer
        acts = 2 * t * max(din_p, h_p) * 2 + 2 * t * h_p * 2 + 2 * t * f_p * 4
        return w_resident + acts

    while tb > BATCH_ALIGN and step_bytes(tb) > (budget * 3) // 4:
        tb = _round_up(tb // 2, BATCH_ALIGN)
    return tb, pl.cdiv(B, tb)


def mlp_predictor(x, params, *, force_tiled=False, single_buffer_residents=True):
    """Forward pass of MLPPredictor (training-mode BatchNorm). x: (B, 2*feature_dim)."""
    B, in_dim = x.shape
    hidden = params["w1"].shape[1]
    feat = params["w3"].shape[1]

    din_p = _round_up(in_dim, LANE)
    h_p = _round_up(hidden, LANE)
    f_p = _round_up(feat, LANE)
    budget = _vmem_budget_bytes()

    f32, bf16 = jnp.float32, jnp.bfloat16

    def pad2(a, r, c, dtype):
        out = jnp.zeros((r, c), dtype)
        return out.at[:a.shape[0], :a.shape[1]].set(a.astype(dtype))

    # bf16 MXU operands; zero padding keeps padded rows/cols mathematically inert.
    w1 = pad2(params["w1"], din_p, h_p, bf16)
    w2 = pad2(params["w2"], h_p, h_p, bf16)
    w3 = pad2(params["w3"], h_p, f_p, bf16)
    b3 = pad2(params["b3"], 1, f_p, f32)
    g1 = pad2(params["g1"], 1, h_p, f32)
    be1 = pad2(params["be1"], 1, h_p, f32)
    g2 = pad2(params["g2"], 1, h_p, f32)
    be2 = pad2(params["be2"], 1, h_p, f32)
    # NOTE: b1 / b2 intentionally dropped: constant pre-BN bias cancels under
    # training-mode BatchNorm mean subtraction.

    # ---------- fused single-kernel fast path (small problems) -------------
    b_pf = _round_up(B, 8)
    if (not force_tiled and b_pf <= 1024
            and _fused_vmem_bytes(b_pf, din_p, h_p, f_p) <= (budget * 2) // 5):
        xp = pad2(x, b_pf, din_p, bf16)
        out_p = pl.pallas_call(
            partial(_fused_mlp_kernel, B, b_pf != B),
            out_shape=jax.ShapeDtypeStruct((b_pf, f_p), f32),
            compiler_params=pltpu.CompilerParams(vmem_limit_bytes=budget),
            cost_estimate=pl.CostEstimate(
                flops=2 * b_pf * h_p * (din_p + h_p + f_p),
                transcendentals=0,
                bytes_accessed=(xp.size + w1.size + w2.size + w3.size) * 2
                               + b_pf * f_p * 4),
        )(xp, w1, w2, w3, g1, be1, g2, be2, b3)
        return out_p[:B, :feat]

    # ---------- batch-tiled 3-call path -------------------------------------
    tb, n_tiles = _pick_batch_tile(B, din_p, h_p, f_p, budget)
    b_p = n_tiles * tb
    needs_mask = b_p != B
    xp = pad2(x, b_p, din_p, bf16)

    def resident(shape, imap):
        # Constant-index operands: single VMEM buffer (no useless double-buffer).
        if single_buffer_residents:
            return pl.BlockSpec(shape, imap, pipeline_mode=pl.Buffered(1))
        return pl.BlockSpec(shape, imap)

    act_spec = pl.BlockSpec((tb, h_p), lambda i: (i, 0))
    vec_h_spec = resident((1, h_p), lambda i: (0, 0))
    stats_spec = pl.BlockSpec((1, 2, h_p), lambda i: (i, 0, 0))
    act_shape = jax.ShapeDtypeStruct((b_p, h_p), bf16)       # bf16 inter-layer acts
    stats_shape = jax.ShapeDtypeStruct((n_tiles, 2, h_p), f32)

    cp = pltpu.CompilerParams(dimension_semantics=("parallel",),
                              vmem_limit_bytes=budget)

    # ---- layer 1: z1 = x @ W1, per-tile BN partial stats -------------------
    z1, st1 = pl.pallas_call(
        _linear_stats_kernel,
        grid=(n_tiles,),
        in_specs=[pl.BlockSpec((tb, din_p), lambda i: (i, 0)),
                  resident((din_p, h_p), lambda i: (0, 0))],
        out_specs=(act_spec, stats_spec),
        out_shape=(act_shape, stats_shape),
        compiler_params=cp,
        cost_estimate=pl.CostEstimate(
            flops=2 * b_p * din_p * h_p, transcendentals=0,
            bytes_accessed=xp.size * 2 + w1.size * 2 + b_p * h_p * 2),
    )(xp, w1)
    scale1, shift1 = _stats_to_scale_shift(st1, g1, be1, B)

    # ---- layer 2: h1 = relu(bn(z1)); z2 = h1 @ W2, per-tile stats ----------
    z2, st2 = pl.pallas_call(
        partial(_bn_relu_linear_stats_kernel, B, tb, needs_mask),
        grid=(n_tiles,),
        in_specs=[act_spec, vec_h_spec, vec_h_spec,
                  resident((h_p, h_p), lambda i: (0, 0))],
        out_specs=(act_spec, stats_spec),
        out_shape=(act_shape, stats_shape),
        compiler_params=cp,
        cost_estimate=pl.CostEstimate(
            flops=2 * b_p * h_p * h_p + 4 * b_p * h_p, transcendentals=0,
            bytes_accessed=2 * b_p * h_p * 2 + w2.size * 2),
    )(z1, scale1, shift1, w2)
    scale2, shift2 = _stats_to_scale_shift(st2, g2, be2, B)

    # ---- layer 3: out = relu(bn(z2)) @ W3 + b3 ------------------------------
    out_p = pl.pallas_call(
        _bn_relu_linear_bias_kernel,
        grid=(n_tiles,),
        in_specs=[act_spec, vec_h_spec, vec_h_spec,
                  resident((h_p, f_p), lambda i: (0, 0)),
                  resident((1, f_p), lambda i: (0, 0))],
        out_specs=pl.BlockSpec((tb, f_p), lambda i: (i, 0)),
        out_shape=jax.ShapeDtypeStruct((b_p, f_p), f32),
        compiler_params=cp,
        cost_estimate=pl.CostEstimate(
            flops=2 * b_p * h_p * f_p + 4 * b_p * h_p, transcendentals=0,
            bytes_accessed=b_p * h_p * 2 + w3.size * 2 + b_p * f_p * 4),
    )(z2, scale2, shift2, w3, b3)

    return out_p[:B, :feat]


# ---------------------------------------------------------------------------
# Parameter init + pure-JAX references
# ---------------------------------------------------------------------------

def init_params(key, feature_dim, hidden_dim):
    """Deterministic synthetic params (shapes match the PyTorch module)."""
    in_dim = feature_dim * 2
    k1, k2, k3, k4, k5, k6 = jax.random.split(key, 6)

    def lin(kw, kb, fan_in, fan_out):
        bound = 1.0 / jnp.sqrt(fan_in)
        w = jax.random.uniform(kw, (fan_in, fan_out), jnp.float32, -bound, bound)
        b = jax.random.uniform(kb, (1, fan_out), jnp.float32, -bound, bound)
        return w, b

    w1, b1 = lin(k1, k2, in_dim, hidden_dim)
    w2, b2 = lin(k3, k4, hidden_dim, hidden_dim)
    w3, b3 = lin(k5, k6, hidden_dim, feature_dim)
    ones = jnp.ones((1, hidden_dim), jnp.float32)
    zeros = jnp.zeros((1, hidden_dim), jnp.float32)
    return {"w1": w1, "b1": b1, "g1": ones, "be1": zeros,
            "w2": w2, "b2": b2, "g2": ones, "be2": zeros,
            "w3": w3, "b3": b3}


def _forward_reference(x, p):
    """PyTorch-semantics forward: f32, training-mode BN, pre-BN biases included."""
    def bn(h, g, be):
        mu = jnp.mean(h, axis=0, keepdims=True)
        var = jnp.mean((h - mu) ** 2, axis=0, keepdims=True)
        return (h - mu) / jnp.sqrt(var + BN_EPS) * g + be

    mm = lambda a, w: jnp.dot(a, w, precision=lax.Precision.HIGHEST)
    h = mm(x, p["w1"]) + p["b1"]
    h = jnp.maximum(bn(h, p["g1"], p["be1"]), 0.0)
    h = mm(h, p["w2"]) + p["b2"]
    h = jnp.maximum(bn(h, p["g2"], p["be2"]), 0.0)
    return mm(h, p["w3"]) + p["b3"]


def _forward_kernel_ref(x, p, act_dtype=None):
    """Mirrors the kernel numerics: bf16 matmul operands (f32 accumulation),
    single-sweep BN stats from the f32 pre-activation, BN folded to one affine,
    optional low-precision storage of the pre-activation before the affine
    (matches the tiled path's bf16 inter-layer activations).  b1/b2 omitted:
    a constant pre-BN bias cancels exactly under training-mode BN."""
    def mm(a, w):
        return jnp.dot(a.astype(jnp.bfloat16).astype(jnp.float32),
                       w.astype(jnp.bfloat16).astype(jnp.float32),
                       precision=lax.Precision.HIGHEST)

    def bn_relu(z, g, be):
        mu = jnp.mean(z, axis=0, keepdims=True)
        var = jnp.maximum(jnp.mean(z * z, axis=0, keepdims=True) - mu * mu, 0.0)
        scale = g * lax.rsqrt(var + BN_EPS)
        shift = be - mu * scale
        if act_dtype is not None:
            z = z.astype(act_dtype).astype(jnp.float32)
        return jnp.maximum(z * scale + shift, 0.0)

    h = bn_relu(mm(x, p["w1"]), p["g1"], p["be1"])
    h = bn_relu(mm(h, p["w2"]), p["g2"], p["be2"])
    return mm(h, p["w3"]) + p["b3"]


if __name__ == "__main__":
    key = jax.random.PRNGKey(0)
    k1, k2, k3, k4 = jax.random.split(key, 4)

    # --- small problem -> fused single-kernel path --------------------------
    feat1, hid1, batch1 = 16, 32, 8
    x1 = jax.random.normal(k1, (batch1, feat1 * 2), jnp.float32)
    p1 = init_params(k2, feat1, hid1)

    out1 = jax.block_until_ready(jax.jit(mlp_predictor)(x1, p1))
    assert out1.shape == (batch1, feat1)
    ref1_tight = _forward_kernel_ref(x1, p1, act_dtype=None)
    assert jnp.allclose(out1, ref1_tight, atol=3e-3, rtol=3e-3), "fused path mismatch"
    ref1_f32 = _forward_reference(x1, p1)
    assert float(jnp.max(jnp.abs(out1 - ref1_f32))) < 6e-2, "fused path drift vs f32"

    # --- larger problem -> batch-tiled 3-call path (mask + >=2 tiles) -------
    feat2, hid2, batch2 = 24, 96, 44
    x2 = jax.random.normal(k3, (batch2, feat2 * 2), jnp.float32)
    p2 = init_params(k4, feat2, hid2)

    tiled = jax.jit(partial(mlp_predictor, force_tiled=True))
    try:
        out2 = jax.block_until_ready(tiled(x2, p2))
    except Exception:
        # Fallback if this Pallas build rejects single-buffered resident blocks.
        tiled = jax.jit(partial(mlp_predictor, force_tiled=True,
                                single_buffer_residents=False))
        out2 = jax.block_until_ready(tiled(x2, p2))
    assert out2.shape == (batch2, feat2)
    ref2_tight = _forward_kernel_ref(x2, p2, act_dtype=jnp.bfloat16)
    assert jnp.allclose(out2, ref2_tight, atol=3e-3, rtol=3e-3), "tiled path mismatch"
    ref2_f32 = _forward_reference(x2, p2)
    assert float(jnp.max(jnp.abs(out2 - ref2_f32))) < 1e-1, "tiled path drift vs f32"

    print("KERNEL_OK")
</pallas_src>

<mosaic_0001>
module attributes {stable_mosaic.version = 11 : i64} {
  func.func @_fused_mlp_kernel(%arg0: memref<8x128xbf16, #tpu.memory_space<vmem>>, %arg1: memref<128x128xbf16, #tpu.memory_space<vmem>>, %arg2: memref<128x128xbf16, #tpu.memory_space<vmem>>, %arg3: memref<128x128xbf16, #tpu.memory_space<vmem>>, %arg4: memref<1x128xf32, #tpu.memory_space<vmem>>, %arg5: memref<1x128xf32, #tpu.memory_space<vmem>>, %arg6: memref<1x128xf32, #tpu.memory_space<vmem>>, %arg7: memref<1x128xf32, #tpu.memory_space<vmem>>, %arg8: memref<1x128xf32, #tpu.memory_space<vmem>>, %arg9: memref<8x128xf32, #tpu.memory_space<vmem>>) attributes {dimension_semantics = [], scalar_prefetch = 0 : i64, scratch_operands = 0 : i64, tpu.core_type = #tpu.core_type<tc>} {
    %c0 = arith.constant 0 : index
    %c0_0 = arith.constant 0 : index
    %0 = vector.load %arg0[%c0, %c0_0] : memref<8x128xbf16, #tpu.memory_space<vmem>>, vector<8x128xbf16>
    %c0_1 = arith.constant 0 : index
    %c0_2 = arith.constant 0 : index
    %1 = vector.load %arg1[%c0_1, %c0_2] : memref<128x128xbf16, #tpu.memory_space<vmem>>, vector<128x128xbf16>
    %cst = arith.constant dense<0.000000e+00> : vector<8x128xf32>
    %2 = tpu.matmul %0, %1, %cst {dimension_numbers = #tpu.dot_dimension_numbers<[1], [0], [0], [1], [0, 0, 1, 1], [], []>} : vector<8x128xbf16>, vector<128x128xbf16>, vector<8x128xf32> -> vector<8x128xf32>
    %c0_3 = arith.constant 0 : index
    %c0_4 = arith.constant 0 : index
    %3 = vector.load %arg4[%c0_3, %c0_4] : memref<1x128xf32, #tpu.memory_space<vmem>>, vector<1x128xf32>
    %c0_5 = arith.constant 0 : index
    %c0_6 = arith.constant 0 : index
    %4 = vector.load %arg5[%c0_5, %c0_6] : memref<1x128xf32, #tpu.memory_space<vmem>>, vector<1x128xf32>
    %cst_7 = arith.constant dense<0.000000e+00> : vector<128xf32>
    %5 = vector.multi_reduction <add>, %2, %cst_7 [0] : vector<8x128xf32> to vector<128xf32>
    %6 = vector.shape_cast %5 : vector<128xf32> to vector<1x128xf32>
    %cst_8 = arith.constant 1.250000e-01 : f32
    %7 = vector.broadcast %cst_8 : f32 to vector<1x128xf32>
    %8 = arith.mulf %6, %7 : vector<1x128xf32>
    %9 = arith.mulf %2, %2 : vector<8x128xf32>
    %cst_9 = arith.constant dense<0.000000e+00> : vector<128xf32>
    %10 = vector.multi_reduction <add>, %9, %cst_9 [0] : vector<8x128xf32> to vector<128xf32>
    %11 = vector.shape_cast %10 : vector<128xf32> to vector<1x128xf32>
    %cst_10 = arith.constant 1.250000e-01 : f32
    %12 = vector.broadcast %cst_10 : f32 to vector<1x128xf32>
    %13 = arith.mulf %11, %12 : vector<1x128xf32>
    %14 = arith.mulf %8, %8 : vector<1x128xf32>
    %15 = arith.subf %13, %14 : vector<1x128xf32>
    %cst_11 = arith.constant 0.000000e+00 : f32
    %16 = vector.broadcast %cst_11 : f32 to vector<1x128xf32>
    %17 = arith.maximumf %15, %16 : vector<1x128xf32>
    %cst_12 = arith.constant 9.99999974E-6 : f32
    %18 = vector.broadcast %cst_12 : f32 to vector<1x128xf32>
    %19 = arith.addf %17, %18 : vector<1x128xf32>
    %20 = math.rsqrt %19 : vector<1x128xf32>
    %21 = arith.mulf %3, %20 : vector<1x128xf32>
    %22 = arith.mulf %8, %21 : vector<1x128xf32>
    %23 = arith.subf %4, %22 : vector<1x128xf32>
    %24 = vector.broadcast %21 : vector<1x128xf32> to vector<8x128xf32>
    %25 = arith.mulf %2, %24 : vector<8x128xf32>
    %26 = vector.broadcast %23 : vector<1x128xf32> to vector<8x128xf32>
    %27 = arith.addf %25, %26 : vector<8x128xf32>
    %cst_13 = arith.constant 0.000000e+00 : f32
    %28 = vector.broadcast %cst_13 : f32 to vector<8x128xf32>
    %29 = arith.maximumf %27, %28 : vector<8x128xf32>
    %30 = arith.truncf %29 : vector<8x128xf32> to vector<8x128xbf16>
    %c0_14 = arith.constant 0 : index
    %c0_15 = arith.constant 0 : index
    %31 = vector.load %arg2[%c0_14, %c0_15] : memref<128x128xbf16, #tpu.memory_space<vmem>>, vector<128x128xbf16>
    %cst_16 = arith.constant dense<0.000000e+00> : vector<8x128xf32>
    %32 = tpu.matmul %30, %31, %cst_16 {dimension_numbers = #tpu.dot_dimension_numbers<[1], [0], [0], [1], [0, 0, 1, 1], [], []>} : vector<8x128xbf16>, vector<128x128xbf16>, vector<8x128xf32> -> vector<8x128xf32>
    %c0_17 = arith.constant 0 : index
    %c0_18 = arith.constant 0 : index
    %33 = vector.load %arg6[%c0_17, %c0_18] : memref<1x128xf32, #tpu.memory_space<vmem>>, vector<1x128xf32>
    %c0_19 = arith.constant 0 : index
    %c0_20 = arith.constant 0 : index
    %34 = vector.load %arg7[%c0_19, %c0_20] : memref<1x128xf32, #tpu.memory_space<vmem>>, vector<1x128xf32>
    %cst_21 = arith.constant dense<0.000000e+00> : vector<128xf32>
    %35 = vector.multi_reduction <add>, %32, %cst_21 [0] : vector<8x128xf32> to vector<128xf32>
    %36 = vector.shape_cast %35 : vector<128xf32> to vector<1x128xf32>
    %cst_22 = arith.constant 1.250000e-01 : f32
    %37 = vector.broadcast %cst_22 : f32 to vector<1x128xf32>
    %38 = arith.mulf %36, %37 : vector<1x128xf32>
    %39 = arith.mulf %32, %32 : vector<8x128xf32>
    %cst_23 = arith.constant dense<0.000000e+00> : vector<128xf32>
    %40 = vector.multi_reduction <add>, %39, %cst_23 [0] : vector<8x128xf32> to vector<128xf32>
    %41 = vector.shape_cast %40 : vector<128xf32> to vector<1x128xf32>
    %cst_24 = arith.constant 1.250000e-01 : f32
    %42 = vector.broadcast %cst_24 : f32 to vector<1x128xf32>
    %43 = arith.mulf %41, %42 : vector<1x128xf32>
    %44 = arith.mulf %38, %38 : vector<1x128xf32>
    %45 = arith.subf %43, %44 : vector<1x128xf32>
    %cst_25 = arith.constant 0.000000e+00 : f32
    %46 = vector.broadcast %cst_25 : f32 to vector<1x128xf32>
    %47 = arith.maximumf %45, %46 : vector<1x128xf32>
    %cst_26 = arith.constant 9.99999974E-6 : f32
    %48 = vector.broadcast %cst_26 : f32 to vector<1x128xf32>
    %49 = arith.addf %47, %48 : vector<1x128xf32>
    %50 = math.rsqrt %49 : vector<1x128xf32>
    %51 = arith.mulf %33, %50 : vector<1x128xf32>
    %52 = arith.mulf %38, %51 : vector<1x128xf32>
    %53 = arith.subf %34, %52 : vector<1x128xf32>
    %54 = vector.broadcast %51 : vector<1x128xf32> to vector<8x128xf32>
    %55 = arith.mulf %32, %54 : vector<8x128xf32>
    %56 = vector.broadcast %53 : vector<1x128xf32> to vector<8x128xf32>
    %57 = arith.addf %55, %56 : vector<8x128xf32>
    %cst_27 = arith.constant 0.000000e+00 : f32
    %58 = vector.broadcast %cst_27 : f32 to vector<8x128xf32>
    %59 = arith.maximumf %57, %58 : vector<8x128xf32>
    %60 = arith.truncf %59 : vector<8x128xf32> to vector<8x128xbf16>
    %c0_28 = arith.constant 0 : index
    %c0_29 = arith.constant 0 : index
    %61 = vector.load %arg3[%c0_28, %c0_29] : memref<128x128xbf16, #tpu.memory_space<vmem>>, vector<128x128xbf16>
    %cst_30 = arith.constant dense<0.000000e+00> : vector<8x128xf32>
    %62 = tpu.matmul %60, %61, %cst_30 {dimension_numbers = #tpu.dot_dimension_numbers<[1], [0], [0], [1], [0, 0, 1, 1], [], []>} : vector<8x128xbf16>, vector<128x128xbf16>, vector<8x128xf32> -> vector<8x128xf32>
    %c0_31 = arith.constant 0 : index
    %c0_32 = arith.constant 0 : index
    %63 = vector.load %arg8[%c0_31, %c0_32] : memref<1x128xf32, #tpu.memory_space<vmem>>, vector<1x128xf32>
    %64 = vector.broadcast %63 : vector<1x128xf32> to vector<8x128xf32>
    %65 = arith.addf %62, %64 : vector<8x128xf32>
    %c0_33 = arith.constant 0 : index
    %c0_34 = arith.constant 0 : index
    %66 = vector.load %arg9[%c0_33, %c0_34] : memref<8x128xf32, #tpu.memory_space<vmem>>, vector<8x128xf32>
    tpu.vector_store %arg9[%c0_33, %c0_34], %65 {strides = array<i32>} : memref<8x128xf32, #tpu.memory_space<vmem>>, vector<8x128xf32>,
    return
  }
}

</mosaic_0001>

<llo_original>
// kernel: mlp_predictor.1
$region0: #{mlp_predictor.1}
  #allocation0 [shape = 'u32[]', space=smem, size = 0x4, offset = 0x4, fixed_abs, tag = 'smem constant byte address 0x4 - core index']
  #allocation1 [shape = 'u32[72,128]{1,0:T(1,128)}', space=vmem, size = 0x9000, scoped, tag = 'internal scratch']
  %s0 = inlined_call_operand.vmem [shape: bf16[8,128], index: 0, kind: input, shape index: {}]
  %s1 = inlined_call_operand.vmem [shape: bf16[128,128], index: 1, kind: input, shape index: {}]
  %s2 = inlined_call_operand.vmem [shape: bf16[128,128], index: 2, kind: input, shape index: {}]
  %s3 = inlined_call_operand.vmem [shape: bf16[128,128], index: 3, kind: input, shape index: {}]
  %s4 = inlined_call_operand.vmem [shape: f32[1,128], index: 4, kind: input, shape index: {}]
  %s5 = inlined_call_operand.vmem [shape: f32[1,128], index: 5, kind: input, shape index: {}]
  %s6 = inlined_call_operand.vmem [shape: f32[1,128], index: 6, kind: input, shape index: {}]
  %s7 = inlined_call_operand.vmem [shape: f32[1,128], index: 7, kind: input, shape index: {}]
  %s8 = inlined_call_operand.vmem [shape: f32[1,128], index: 8, kind: input, shape index: {}]
  %s9 = inlined_call_operand.hbm [shape: f32[8,128], index: 9, kind: output, shape index: {}]
  %s10 = sld [smem:[#allocation0]]
  $region46: #{mlp_predictor.1} parent=0
    _
  %s12 = ssub.s32 1, %s10
  %s13 = scalar_select 0, %s12, %s10
  $region1: #{mlp_predictor.1} parent=0
    #allocation2 [shape = 'u8[4096]{0}', space=vmem, size = 0x1000, scoped, tag = 'output window, operand 0, single buffered']
    #allocation3 [shape = 's32[1]{0}', space=sflag, size = 0x4, scoped, tag = 'scoped memory for mlp_predictor.1']
    %14 = vsyncpa [#allocation3], 0
    // Predicated region
    $region2: #{mlp_predictor.1} parent=1 // pred_check
      _
    $region3: #{mlp_predictor.1} parent=1 // pred_check_branch
      %16 = sbr.rel (0) target = $region5
    $region4: #{mlp_predictor.1} parent=1 // pred_region
      _
    $region5: #{mlp_predictor.1} parent=1 // pred_fallthru
      _
    // Predicated region
    $region6: #{mlp_predictor.1} parent=1 // pred_check
      _
    $region7: #{mlp_predictor.1} parent=1 // pred_check_branch
      %18 = sbr.rel (0) target = $region9
    $region8: #{mlp_predictor.1} parent=1 // pred_region
      _
    $region9: #{mlp_predictor.1} parent=1 // pred_fallthru
      _
    // Predicated region
    $region10: #{mlp_predictor.1} parent=1 // pred_check
      _
    $region11: #{mlp_predictor.1} parent=1 // pred_check_branch
      %20 = sbr.rel (0) target = $region13
    $region12: #{mlp_predictor.1} parent=1 // pred_region
      _
    $region13: #{mlp_predictor.1} parent=1 // pred_fallthru
      _
    // Predicated region
    $region14: #{mlp_predictor.1} parent=1 // pred_check
      _
    $region15: #{mlp_predictor.1} parent=1 // pred_check_branch
      %22 = sbr.rel (0) target = $region17
    $region16: #{mlp_predictor.1} parent=1 // pred_region
      _
    $region17: #{mlp_predictor.1} parent=1 // pred_fallthru
      _
    // Predicated region
    $region18: #{mlp_predictor.1} parent=1 // pred_check
      _
    $region19: #{mlp_predictor.1} parent=1 // pred_check_branch
      %24 = sbr.rel (0) target = $region21
    $region20: #{mlp_predictor.1} parent=1 // pred_region
      _
    $region21: #{mlp_predictor.1} parent=1 // pred_fallthru
      _
    // Predicated region
    $region22: #{mlp_predictor.1} parent=1 // pred_check
      _
    $region23: #{mlp_predictor.1} parent=1 // pred_check_branch
      %26 = sbr.rel (0) target = $region25
    $region24: #{mlp_predictor.1} parent=1 // pred_region
      _
    $region25: #{mlp_predictor.1} parent=1 // pred_fallthru
      _
    // Predicated region
    $region26: #{mlp_predictor.1} parent=1 // pred_check
      _
    $region27: #{mlp_predictor.1} parent=1 // pred_check_branch
      %28 = sbr.rel (0) target = $region29
    $region28: #{mlp_predictor.1} parent=1 // pred_region
      _
    $region29: #{mlp_predictor.1} parent=1 // pred_fallthru
      _
    // Predicated region
    $region30: #{mlp_predictor.1} parent=1 // pred_check
      _
    $region31: #{mlp_predictor.1} parent=1 // pred_check_branch
      %30 = sbr.rel (0) target = $region33
    $region32: #{mlp_predictor.1} parent=1 // pred_region
      _
    $region33: #{mlp_predictor.1} parent=1 // pred_fallthru
      _
    // Predicated region
    $region34: #{mlp_predictor.1} parent=1 // pred_check
      _
    $region35: #{mlp_predictor.1} parent=1 // pred_check_branch
      %32 = sbr.rel (0) target = $region37
    $region36: #{mlp_predictor.1} parent=1 // pred_region
      _
    $region37: #{mlp_predictor.1} parent=1 // pred_fallthru
      _
    %v33 = vld [vmem:[%s0] sm:$0xf]
    %v34 = vld [vmem:[%s1] sm:$0xf]
    %v35 = vld [vmem:[%s1 + $0x4] sm:$0xf]
    %v36 = vld [vmem:[%s1 + $0x8] sm:$0xf]
    %v37 = vld [vmem:[%s1 + $0xc] sm:$0xf]
    %v38 = vld [vmem:[%s1 + $0x10] sm:$0xf]
    %v39 = vld [vmem:[%s1 + $0x14] sm:$0xf]
    %v40 = vld [vmem:[%s1 + $0x18] sm:$0xf]
    %v41 = vld [vmem:[%s1 + $0x1c] sm:$0xf]
    %v42 = vld [vmem:[%s1 + $0x20] sm:$0xf]
    %v43 = vld [vmem:[%s1 + $0x24] sm:$0xf]
    %v44 = vld [vmem:[%s1 + $0x28] sm:$0xf]
    %v45 = vld [vmem:[%s1 + $0x2c] sm:$0xf]
    %v46 = vld [vmem:[%s1 + $0x30] sm:$0xf]
    %v47 = vld [vmem:[%s1 + $0x34] sm:$0xf]
    %v48 = vld [vmem:[%s1 + $0x38] sm:$0xf]
    %v49 = vld [vmem:[%s1 + $0x3c] sm:$0xf]
    %v66 = vunpack.c.l.b16 %v34
    %v67 = vunpack.c.l.b16 %v35
    %v68 = vunpack.c.l.b16 %v36
    %v69 = vunpack.c.l.b16 %v37
    %v70 = vunpack.c.l.b16 %v38
    %v71 = vunpack.c.l.b16 %v39
    %v72 = vunpack.c.l.b16 %v40
    %v73 = vunpack.c.l.b16 %v41
    %v74 = vunpack.c.l.b16 %v42
    %v75 = vunpack.c.l.b16 %v43
    %v76 = vunpack.c.l.b16 %v44
    %v77 = vunpack.c.l.b16 %v45
    %v78 = vunpack.c.l.b16 %v46
    %v79 = vunpack.c.l.b16 %v47
    %v80 = vunpack.c.l.b16 %v48
    %v81 = vunpack.c.l.b16 %v49
    %v82 = vpack.c.b16 %v67, %v66
    %v83 = vpack.c.b16 %v69, %v68
    %v84 = vpack.c.b16 %v71, %v70
    %v85 = vpack.c.b16 %v73, %v72
    %v86 = vpack.c.b16 %v75, %v74
    %v87 = vpack.c.b16 %v77, %v76
    %v88 = vpack.c.b16 %v79, %v78
    %v89 = vpack.c.b16 %v81, %v80
    %98 = vmatpush.bf16.msra.mxu0 %v89
    %99 = vmatpush.bf16.msra.mxu0 %v88
    %100 = vmatpush.bf16.msra.mxu0 %v87
    %101 = vmatpush.bf16.msra.mxu0 %v86
    %102 = vmatpush.bf16.msra.mxu0 %v85
    %103 = vmatpush.bf16.msra.mxu0 %v84
    %104 = vmatpush.bf16.msra.mxu0 %v83
    %105 = vmatpush.bf16.msra.mxu0 %v82
    %106 = vmatmul.bf16.gmra.mxu0 %v33
    %v107 = vpop.f32.mrf.mxu0
    %v108 = vadd.f32 0.0, %v107
    %v109 = vpop.f32.mrf.mxu0
    %110 = vdwg.mxu0
    %v111 = vld [vmem:[%s4] sm:$0x1]
    %v112 = vld [vmem:[%s5] sm:$0x1]
    %v113 = vrot.slane %v108, 4
    %v114 = vadd.f32 %v108, %v113
    %v115 = vrot.slane %v114, 2
    %v116 = vadd.f32 %v114, %v115
    %v117 = vrot.slane %v116, 1
    %v118 = vadd.f32 %v116, %v117
    %v119 = vmul.f32 %v118, 0.125
    %v120 = vmul.f32 %v108, %v108
    %v121 = vrot.slane %v120, 4
    %v122 = vadd.f32 %v120, %v121
    %v123 = vrot.slane %v122, 2
    %v124 = vadd.f32 %v122, %v123
    %v125 = vrot.slane %v124, 1
    %v126 = vadd.f32 %v124, %v125
    %v127 = vmul.f32 %v126, 0.125
    %v128 = vmul.f32 %v119, %v119
    %v129 = vsub.f32 %v127, %v128
    %v130 = vmax.f32 %v129, 0.0
    %v131 = vadd.f32 %v130, 1e-05
    %v132 = vrsqrt.pop %v131
    %v133 = vmul.f32 %v132, %v131
    %v134 = vmul.f32 %v133, %v132
    %v135 = vmul.f32 0.5, %v134
    %v136 = vsub.f32 1.5, %v135
    %v137 = vmul.f32 %v132, %v136
    %vm138 = vweird.f32 %v131
    %vm139 = vweird.f32 %v132
    %vm140 = vmor %vm138, %vm139
    %v141 = vsel %vm140, %v132, %v137
    %v142 = vmul.f32 %v111, %v141
    %v143 = vmul.f32 %v119, %v142
    %v144 = vsub.f32 %v112, %v143
    %v146 = vperm.slane %v142, 0
    %v148 = vmul.f32 %v108, %v146
    %v150 = vperm.slane %v144, 0
    %v152 = vadd.f32 %v148, %v150
    %v153 = vmax.f32 %v152, 0.0
    %v154 = vpack.c.bf16 %v153, %v153
    %v155 = vld [vmem:[%s2] sm:$0xf]
    %v156 = vld [vmem:[%s2 + $0x4] sm:$0xf]
    %v157 = vld [vmem:[%s2 + $0x8] sm:$0xf]
    %v158 = vld [vmem:[%s2 + $0xc] sm:$0xf]
    %v159 = vld [vmem:[%s2 + $0x10] sm:$0xf]
    %v160 = vld [vmem:[%s2 + $0x14] sm:$0xf]
    %v161 = vld [vmem:[%s2 + $0x18] sm:$0xf]
    %v162 = vld [vmem:[%s2 + $0x1c] sm:$0xf]
    %v163 = vld [vmem:[%s2 + $0x20] sm:$0xf]
    %v164 = vld [vmem:[%s2 + $0x24] sm:$0xf]
    %v165 = vld [vmem:[%s2 + $0x28] sm:$0xf]
    %v166 = vld [vmem:[%s2 + $0x2c] sm:$0xf]
    %v167 = vld [vmem:[%s2 + $0x30] sm:$0xf]
    %v168 = vld [vmem:[%s2 + $0x34] sm:$0xf]
    %v169 = vld [vmem:[%s2 + $0x38] sm:$0xf]
    %v170 = vld [vmem:[%s2 + $0x3c] sm:$0xf]
    %v187 = vunpack.c.l.b16 %v155
    %v188 = vunpack.c.l.b16 %v156
    %v189 = vunpack.c.l.b16 %v157
    %v190 = vunpack.c.l.b16 %v158
    %v191 = vunpack.c.l.b16 %v159
    %v192 = vunpack.c.l.b16 %v160
    %v193 = vunpack.c.l.b16 %v161
    %v194 = vunpack.c.l.b16 %v162
    %v195 = vunpack.c.l.b16 %v163
    %v196 = vunpack.c.l.b16 %v164
    %v197 = vunpack.c.l.b16 %v165
    %v198 = vunpack.c.l.b16 %v166
    %v199 = vunpack.c.l.b16 %v167
    %v200 = vunpack.c.l.b16 %v168
    %v201 = vunpack.c.l.b16 %v169
    %v202 = vunpack.c.l.b16 %v170
    %v203 = vpack.c.b16 %v188, %v187
    %v204 = vpack.c.b16 %v190, %v189
    %v205 = vpack.c.b16 %v192, %v191
    %v206 = vpack.c.b16 %v194, %v193
    %v207 = vpack.c.b16 %v196, %v195
    %v208 = vpack.c.b16 %v198, %v197
    %v209 = vpack.c.b16 %v200, %v199
    %v210 = vpack.c.b16 %v202, %v201
    %219 = vmatpush.bf16.msra.mxu0 %v210
    %220 = vmatpush.bf16.msra.mxu0 %v209
    %221 = vmatpush.bf16.msra.mxu0 %v208
    %222 = vmatpush.bf16.msra.mxu0 %v207
    %223 = vmatpush.bf16.msra.mxu0 %v206
    %224 = vmatpush.bf16.msra.mxu0 %v205
    %225 = vmatpush.bf16.msra.mxu0 %v204
    %226 = vmatpush.bf16.msra.mxu0 %v203
    %227 = vmatmul.bf16.gmra.mxu0 %v154
    %v228 = vpop.f32.mrf.mxu0
    %v229 = vadd.f32 0.0, %v228
    %v230 = vpop.f32.mrf.mxu0
    %231 = vdwg.mxu0
    %v232 = vld [vmem:[%s6] sm:$0x1]
    %v233 = vld [vmem:[%s7] sm:$0x1]
    %v234 = vrot.slane %v229, 4
    %v235 = vadd.f32 %v229, %v234
    %v236 = vrot.slane %v235, 2
    %v237 = vadd.f32 %v235, %v236
    %v238 = vrot.slane %v237, 1
    %v239 = vadd.f32 %v237, %v238
    %v240 = vmul.f32 %v239, 0.125
    %v241 = vmul.f32 %v229, %v229
    %v242 = vrot.slane %v241, 4
    %v243 = vadd.f32 %v241, %v242
    %v244 = vrot.slane %v243, 2
    %v245 = vadd.f32 %v243, %v244
    %v246 = vrot.slane %v245, 1
    %v247 = vadd.f32 %v245, %v246
    %v248 = vmul.f32 %v247, 0.125
    %v249 = vmul.f32 %v240, %v240
    %v250 = vsub.f32 %v248, %v249
    %v251 = vmax.f32 %v250, 0.0
    %v252 = vadd.f32 %v251, 1e-05
    %v253 = vrsqrt.pop %v252
    %v254 = vmul.f32 %v253, %v252
    %v255 = vmul.f32 %v254, %v253
    %v256 = vmul.f32 0.5, %v255
    %v257 = vsub.f32 1.5, %v256
    %v258 = vmul.f32 %v253, %v257
    %vm259 = vweird.f32 %v252
    %vm260 = vweird.f32 %v253
    %vm261 = vmor %vm259, %vm260
    %v262 = vsel %vm261, %v253, %v258
    %v263 = vmul.f32 %v232, %v262
    %v264 = vmul.f32 %v240, %v263
    %v265 = vsub.f32 %v233, %v264
    %v267 = vperm.slane %v263, 0
    %v269 = vmul.f32 %v229, %v267
    %v271 = vperm.slane %v265, 0
    %v273 = vadd.f32 %v269, %v271
    %v274 = vmax.f32 %v273, 0.0
    %v275 = vpack.c.bf16 %v274, %v274
    %v276 = vld [vmem:[%s3] sm:$0xf]
    %v277 = vld [vmem:[%s3 + $0x4] sm:$0xf]
    %v278 = vld [vmem:[%s3 + $0x8] sm:$0xf]
    %v279 = vld [vmem:[%s3 + $0xc] sm:$0xf]
    %v280 = vld [vmem:[%s3 + $0x10] sm:$0xf]
    %v281 = vld [vmem:[%s3 + $0x14] sm:$0xf]
    %v282 = vld [vmem:[%s3 + $0x18] sm:$0xf]
    %v283 = vld [vmem:[%s3 + $0x1c] sm:$0xf]
    %v284 = vld [vmem:[%s3 + $0x20] sm:$0xf]
    %v285 = vld [vmem:[%s3 + $0x24] sm:$0xf]
    %v286 = vld [vmem:[%s3 + $0x28] sm:$0xf]
    %v287 = vld [vmem:[%s3 + $0x2c] sm:$0xf]
    %v288 = vld [vmem:[%s3 + $0x30] sm:$0xf]
    %v289 = vld [vmem:[%s3 + $0x34] sm:$0xf]
    %v290 = vld [vmem:[%s3 + $0x38] sm:$0xf]
    %v291 = vld [vmem:[%s3 + $0x3c] sm:$0xf]
    %v292 = vld [vmem:[%s8] sm:$0x1]
    %v294 = vperm.slane %v292, 0
    %v312 = vunpack.c.l.b16 %v276
    %v313 = vunpack.c.l.b16 %v277
    %v314 = vunpack.c.l.b16 %v278
    %v315 = vunpack.c.l.b16 %v279
    %v316 = vunpack.c.l.b16 %v280
    %v317 = vunpack.c.l.b16 %v281
    %v318 = vunpack.c.l.b16 %v282
    %v319 = vunpack.c.l.b16 %v283
    %v320 = vunpack.c.l.b16 %v284
    %v321 = vunpack.c.l.b16 %v285
    %v322 = vunpack.c.l.b16 %v286
    %v323 = vunpack.c.l.b16 %v287
    %v324 = vunpack.c.l.b16 %v288
    %v325 = vunpack.c.l.b16 %v289
    %v326 = vunpack.c.l.b16 %v290
    %v327 = vunpack.c.l.b16 %v291
    %v328 = vpack.c.b16 %v313, %v312
    %v329 = vpack.c.b16 %v315, %v314
    %v330 = vpack.c.b16 %v317, %v316
    %v331 = vpack.c.b16 %v319, %v318
    %v332 = vpack.c.b16 %v321, %v320
    %v333 = vpack.c.b16 %v323, %v322
    %v334 = vpack.c.b16 %v325, %v324
    %v335 = vpack.c.b16 %v327, %v326
    %344 = vmatpush.bf16.msra.mxu0 %v335
    %345 = vmatpush.bf16.msra.mxu0 %v334
    %346 = vmatpush.bf16.msra.mxu0 %v333
    %347 = vmatpush.bf16.msra.mxu0 %v332
    %348 = vmatpush.bf16.msra.mxu0 %v331
    %349 = vmatpush.bf16.msra.mxu0 %v330
    %350 = vmatpush.bf16.msra.mxu0 %v329
    %351 = vmatpush.bf16.msra.mxu0 %v328
    %352 = vmatmul.bf16.gmra.mxu0 %v275
    %v353 = vpop.f32.mrf.mxu0
    %v354 = vadd.f32 %v294, %v353
    %v355 = vpop.f32.mrf.mxu0
    %356 = vdwg.mxu0
    %357 = vst [vmem:[#allocation2] sm:$0xff] %v354
    // Predicated region
    $region38: #{mlp_predictor.1} parent=1 // pred_check
      _
    $region39: #{mlp_predictor.1} parent=1 // pred_check_branch
      %359 = sbr.rel (0) target = $region41
    $region40: #{mlp_predictor.1} parent=1 // pred_region
      %361 = vsyncadd [#allocation3], 0
      %s363 = sshll.u32 [#allocation2], 4
      %s364 = int_to_ptr.vmem [resolvable:$true] %s363
      %s365 = sshll.u32 %s9, 4
      %s366 = int_to_ptr.hbm [resolvable:$true] %s365
      %368 = dma.vmem_to_hbm [thread:$0]  %s364, 128, %s366, [#allocation3]
    $region41: #{mlp_predictor.1} parent=1 // pred_fallthru
      _
    // Predicated region
    $region42: #{mlp_predictor.1} parent=1 // pred_check
      _
    $region43: #{mlp_predictor.1} parent=1 // pred_check_branch
      %370 = sbr.rel (0) target = $region45
    $region44: #{mlp_predictor.1} parent=1 // pred_region
      %372 = dma.done [#allocation3], 128
    $region45: #{mlp_predictor.1} parent=1 // pred_fallthru
      _
    %373 = vsyncpa [#allocation3], 1

</llo_original>
